<compile_context>
chip_gen: v7x
topology: tpu7x:2x2x1
jax: 0.10.0
libtpu: 0.0.40
codegen_flags: <defaults>
</compile_context>

<pallas_src>
import functools

import jax
import jax.numpy as jnp
from jax.experimental import pallas as pl
from jax.experimental.pallas import tpu as pltpu

_MiB = 1024 * 1024


# --------------------------------------------------------------------------------------
# Hardware-aware defaults
# --------------------------------------------------------------------------------------
def _vmem_capacity_bytes():
    try:
        info = pltpu.get_tpu_info()
        cap = getattr(info, "vmem_capacity_bytes", None)
        return int(cap) if cap else 0
    except Exception:
        return 0


def _default_vmem_limit_bytes():
    cap = _vmem_capacity_bytes()
    if cap <= 0:
        return 32 * _MiB                      # conservative fallback (scoped default)
    # Leave ~16 MiB of headroom for compiler-internal scratch.
    # v5e/v6e (128 MiB) -> 112 MiB; v7x (64 MiB per TC) -> 48 MiB.
    return int(max(32 * _MiB, min(cap - 16 * _MiB, 112 * _MiB)))


# --------------------------------------------------------------------------------------
# Kernel 1: masked mean pooling + L2 normalization  ->  x_n (B, H) bf16
# --------------------------------------------------------------------------------------
def _pool_l2norm_kernel(tok_ref, mask_ref, xn_ref):
    # tok_ref : (tile_b, S, H)  token embeddings (f32 or bf16)
    # mask_ref: (tile_b, S)     term / attention mask
    # xn_ref  : (tile_b, H)     L2-normalized pooled vectors (bf16)
    tok = tok_ref[...].astype(jnp.float32)
    mask = mask_ref[...].astype(jnp.float32)

    summed = jnp.sum(tok * mask[:, :, None], axis=1)                  # (tile_b, H)
    counts = jnp.maximum(jnp.sum(mask, axis=1, keepdims=True), 1e-8)  # clamp(min=1e-8)
    pooled = summed / counts

    sq = jnp.sum(pooled * pooled, axis=1, keepdims=True)              # (tile_b, 1)
    inv_norm = jax.lax.rsqrt(jnp.maximum(sq, 1e-16))                  # == 1/max(norm, 1e-8)
    xn_ref[...] = (pooled * inv_norm).astype(xn_ref.dtype)


def mean_pool_l2_normalize(token_embeddings, attention_mask, *,
                           out_dtype=jnp.bfloat16, tile_b=None, vmem_limit_bytes=None):
    """token_embeddings: (B, S, H) f32 or bf16; attention_mask: (B, S). Returns (B, H) bf16."""
    B, S, H = token_embeddings.shape
    if vmem_limit_bytes is None:
        vmem_limit_bytes = _default_vmem_limit_bytes()

    if tile_b is None:
        tile_b = B
        itemsize = jnp.dtype(token_embeddings.dtype).itemsize
        per_b = 2 * S * H * itemsize + 2 * S * 4 + 2 * H * 2     # double-buffered blocks
        max_tb = max(1, int(vmem_limit_bytes * 0.6) // per_b)
        if max_tb < B:
            cand = (max_tb // 8) * 8
            while cand >= 8 and B % cand != 0:
                cand -= 8
            tile_b = cand if cand >= 8 else B
    assert B % tile_b == 0 and (tile_b == B or tile_b % 8 == 0), "bad pooling tile_b"

    return pl.pallas_call(
        _pool_l2norm_kernel,
        out_shape=jax.ShapeDtypeStruct((B, H), out_dtype),
        grid_spec=pltpu.PrefetchScalarGridSpec(
            num_scalar_prefetch=0,
            grid=(B // tile_b,),
            in_specs=[
                pl.BlockSpec((tile_b, S, H), lambda b: (b, 0, 0)),
                pl.BlockSpec((tile_b, S), lambda b: (b, 0)),
            ],
            out_specs=pl.BlockSpec((tile_b, H), lambda b: (b, 0)),
        ),
        compiler_params=pltpu.CompilerParams(
            dimension_semantics=("parallel",),
            vmem_limit_bytes=vmem_limit_bytes,
        ),
    )(token_embeddings, attention_mask)


# --------------------------------------------------------------------------------------
# Kernel 2: cosine similarity + softmax over the thesaurus (streamed over T)
# --------------------------------------------------------------------------------------
def _cos_softmax_resident_kernel(xn_ref, thes_ref, out_ref, l_sc, *, tile_t):
    # xn_ref  : (tile_b, H)      bf16 normalized queries (resident across t)
    # thes_ref: (H, tile_t)      bf16 normalized thesaurus tile (streamed over t)
    # out_ref : (tile_b, T)      resident output: exp(logits - 1), normalized at the end
    # l_sc    : (tile_b, 1) f32  softmax denominator accumulator
    t = pl.program_id(1)
    num_t = pl.num_programs(1)

    @pl.when(t == 0)
    def _init():
        l_sc[...] = jnp.zeros(l_sc.shape, dtype=l_sc.dtype)

    # cosine similarity tile on the MXU: bf16 operands, f32 accumulation
    logits = jnp.dot(xn_ref[...], thes_ref[...],
                     preferred_element_type=jnp.float32)              # (tile_b, tile_t)

    # Both operands are L2-normalized, so logits <= ~1 (bf16 rounding may push it a hair
    # above 1.0, which is still numerically safe). Constant max = 1.0 -> no running max.
    e = jnp.exp(logits - 1.0)
    l_sc[...] += jnp.sum(e, axis=1, keepdims=True)

    start = pl.multiple_of(t * tile_t, tile_t)
    out_ref[:, pl.ds(start, tile_t)] = e                              # lane-dense store

    @pl.when(t == num_t - 1)
    def _finalize():
        # exact normalization: rows sum to 1 (single multiply, no exp burst)
        out_ref[...] = out_ref[...] * pl.reciprocal(l_sc[...], approx=False)


def _cos_softmax_stream_kernel(xn_ref, thes_ref, exp_ref, l_ref):
    # Streamed-output variant for large T (e.g. v7x 64 MiB VMEM): writes exp(logits - 1)
    # tiles to HBM and emits the denominator l; the final divide happens outside.
    t = pl.program_id(1)

    @pl.when(t == 0)
    def _init():
        l_ref[...] = jnp.zeros(l_ref.shape, dtype=l_ref.dtype)

    logits = jnp.dot(xn_ref[...], thes_ref[...],
                     preferred_element_type=jnp.float32)              # (tile_b, tile_t)
    e = jnp.exp(logits - 1.0)
    exp_ref[...] = e
    l_ref[...] = l_ref[...] + jnp.sum(e, axis=1, keepdims=True)


def _pick_tile_t(T, H, tile_b, vmem_limit_bytes, stream_out, thes_buffers):
    """Largest multiple-of-128 tile that divides T and fits the VMEM budget."""
    fixed = 2 * tile_b * H * 2                  # resident x_n block (bf16, double-buffered)
    fixed += tile_b * 4                         # denominator scratch / output (negligible)
    if not stream_out:
        fixed += 2 * tile_b * T * 4             # resident (tile_b, T) f32 output block
    budget = int(vmem_limit_bytes * 0.85) - fixed
    per_t = thes_buffers * H * 2 + (2 * tile_b * 4 if stream_out else 0)
    cand = min(T, (max(budget, 0) // per_t // 128) * 128)
    while cand >= 128:
        if T % cand == 0:
            return cand
        cand -= 128
    return T                                     # fallback: single full-width tile


def cosine_softmax(x_n, thesaurus_normalized_embs, *, tile_t=None, tile_b=None,
                   stream_out=None, vmem_limit_bytes=None, thes_buffers=None):
    """x_n: (B, H) normalized queries; thesaurus_normalized_embs: (H, T) pre-normalized.
    Returns softmax probabilities (B, T) f32."""
    B, H = x_n.shape
    H2, T = thesaurus_normalized_embs.shape
    assert H == H2

    # Host-side dtype guards: never widen the dominant HBM stream inside the kernel.
    thes = thesaurus_normalized_embs
    if thes.dtype != jnp.bfloat16:
        thes = thes.astype(jnp.bfloat16)
    if x_n.dtype != jnp.bfloat16:
        x_n = x_n.astype(jnp.bfloat16)

    if vmem_limit_bytes is None:
        vmem_limit_bytes = _default_vmem_limit_bytes()

    # Do NOT tile B by default: every b-tile re-streams the entire thesaurus.
    # TODO(synk): for v7x megacore, split the T axis across the 2 TensorCores
    #             (per-core partial denominators + cheap combine) instead of B.
    if tile_b is None:
        tile_b = B
    assert B % tile_b == 0 and (tile_b == B or tile_b % 8 == 0), "bad tile_b"
    num_b_tiles = B // tile_b

    # Output mode: resident (tile_b, T) f32 block unless it would eat too much VMEM.
    if stream_out is None:
        stream_out = (2 * tile_b * T * 4) > (vmem_limit_bytes // 3)

    cap = _vmem_capacity_bytes()
    auto_buffers = thes_buffers is None
    if auto_buffers:
        # v5e/v6e (>=100 MiB VMEM): a 3rd thesaurus buffer hides DMA jitter on the
        # lowest-bandwidth chips; v7x keeps the default double buffer.
        thes_buffers = 3 if cap >= 100 * _MiB else 2

    if tile_t is None:
        tile_t = _pick_tile_t(T, H, tile_b, vmem_limit_bytes, stream_out, thes_buffers)
    assert T % tile_t == 0, "tile_t must divide T"
    assert tile_t == T or tile_t % 128 == 0, "tile_t must be a multiple of 128 (or == T)"
    num_t = T // tile_t
    if auto_buffers and num_t < 4:
        thes_buffers = 2                        # too few tiles for deeper buffering to help

    xn_spec = pl.BlockSpec((tile_b, H), lambda b, t: (b, 0))           # resident across t
    if thes_buffers == 2:
        thes_spec = pl.BlockSpec((H, tile_t), lambda b, t: (0, t))     # streamed over t
    else:
        thes_spec = pl.BlockSpec((H, tile_t), lambda b, t: (0, t),
                                 pipeline_mode=pl.Buffered(thes_buffers))

    cost = pl.CostEstimate(
        flops=2 * B * H * T,
        transcendentals=B * T,                   # one exp per logit (constant-max trick)
        bytes_accessed=(B * H * 2                # x_n (bf16)
                        + num_b_tiles * H * T * 2   # thesaurus stream (re-read per b tile)
                        + B * T * 4 + B * 4),    # outputs
    )
    cparams = pltpu.CompilerParams(
        dimension_semantics=("parallel", "arbitrary"),
        vmem_limit_bytes=vmem_limit_bytes,
    )

    if stream_out:
        exp_vals, l = pl.pallas_call(
            _cos_softmax_stream_kernel,
            out_shape=(jax.ShapeDtypeStruct((B, T), jnp.float32),
                       jax.ShapeDtypeStruct((B, 1), jnp.float32)),
            grid_spec=pltpu.PrefetchScalarGridSpec(
                num_scalar_prefetch=0,
                grid=(num_b_tiles, num_t),
                in_specs=[xn_spec, thes_spec],
                out_specs=[pl.BlockSpec((tile_b, tile_t), lambda b, t: (b, t)),
                           pl.BlockSpec((tile_b, 1), lambda b, t: (b, 0))],
            ),
            compiler_params=cparams,
            cost_estimate=cost,
        )(x_n, thes)
        return exp_vals / l                      # cheap trailing XLA elementwise divide

    kernel = functools.partial(_cos_softmax_resident_kernel, tile_t=tile_t)
    return pl.pallas_call(
        kernel,
        out_shape=jax.ShapeDtypeStruct((B, T), jnp.float32),
        grid_spec=pltpu.PrefetchScalarGridSpec(
            num_scalar_prefetch=0,
            grid=(num_b_tiles, num_t),
            in_specs=[xn_spec, thes_spec],
            out_specs=pl.BlockSpec((tile_b, T), lambda b, t: (b, 0)),  # resident block
            scratch_shapes=[pltpu.VMEM((tile_b, 1), jnp.float32)],     # denominator
        ),
        compiler_params=cparams,
        cost_estimate=cost,
    )(x_n, thes)


# --------------------------------------------------------------------------------------
# Full forward + host-side helpers
# --------------------------------------------------------------------------------------
def cadec_sota_forward(token_embeddings, attention_mask, thesaurus_normalized_embs, **kw):
    """token_embeddings: (B, S, H) f32/bf16; attention_mask: (B, S);
    thesaurus_normalized_embs: (H, T) pre-normalized (bf16 preferred).
    Returns softmax probabilities (B, T) f32 (== CADEC_SoTa_output.data['output'])."""
    x_n = mean_pool_l2_normalize(token_embeddings, attention_mask,
                                 vmem_limit_bytes=kw.get("vmem_limit_bytes"))
    return cosine_softmax(x_n, thesaurus_normalized_embs, **kw)


def normalize_thesaurus(emb, dtype=jnp.bfloat16):
    """Mirror of CADEC_SoTa._normalize_embeddings (host-side parameter setup).
    emb: (thesaurus_len, H) -> (H, thesaurus_len); stored bf16 to halve HBM traffic.
    TODO(synk): int8 (v5e/v6e) / fp8-e4m3 (v7x) quantization with per-concept scales."""
    emb = emb.astype(jnp.float32)
    n = jnp.maximum(jnp.linalg.norm(emb, axis=1, keepdims=True), 1e-8)
    return (emb / n).T.astype(dtype)


def reference_forward(token_embeddings, attention_mask, thes_T_f32):
    """Pure-JAX f32 reference of the same forward, for correctness checking."""
    m = attention_mask[:, :, None]
    pooled = jnp.sum(token_embeddings * m, axis=1) / jnp.maximum(jnp.sum(m, axis=1), 1e-8)
    norm = jnp.maximum(jnp.linalg.norm(pooled, axis=1, keepdims=True), 1e-8)
    x_n = pooled / norm
    cos_sim = x_n @ thes_T_f32
    return jax.nn.softmax(cos_sim, axis=1)


if __name__ == "__main__":
    key = jax.random.PRNGKey(0)
    k1, k2 = jax.random.split(key)

    B, S, H, T = 8, 16, 128, 256          # batch, seq, hidden, thesaurus_len
    TILE_T = 128                          # 2 thesaurus tiles -> exercises the T stream

    token_embeddings = jax.random.normal(k1, (B, S, H), dtype=jnp.float32)

    # variable-length attention masks (first `len` tokens valid)
    lengths = jnp.array([16, 12, 8, 5, 16, 3, 10, 7], dtype=jnp.int32)
    attention_mask = (jnp.arange(S)[None, :] < lengths[:, None]).astype(jnp.float32)

    thesaurus_embeddings = jax.random.normal(k2, (T, H), dtype=jnp.float32)
    thes_T = normalize_thesaurus(thesaurus_embeddings)    # (H, T) bf16

    ref = reference_forward(token_embeddings, attention_mask, thes_T.astype(jnp.float32))

    # Path 1: resident output block, in-kernel normalization (small/medium T).
    out1 = cadec_sota_forward(token_embeddings, attention_mask, thes_T,
                              tile_t=TILE_T, stream_out=False)
    out1 = jax.block_until_ready(out1)
    assert out1.shape == (B, T)
    assert jnp.allclose(jnp.sum(out1, axis=1), 1.0, atol=1e-4), "softmax rows must sum to 1"
    assert jnp.allclose(out1, ref, atol=1e-3, rtol=1e-2), "resident-path mismatch vs reference"

    # Path 2: streamed output + trailing divide (large-T / v7x configuration).
    out2 = cadec_sota_forward(token_embeddings, attention_mask, thes_T,
                              tile_t=TILE_T, stream_out=True)
    out2 = jax.block_until_ready(out2)
    assert out2.shape == (B, T)
    assert jnp.allclose(jnp.sum(out2, axis=1), 1.0, atol=1e-4), "softmax rows must sum to 1"
    assert jnp.allclose(out2, ref, atol=1e-3, rtol=1e-2), "streamed-path mismatch vs reference"

    print("KERNEL_OK")
</pallas_src>

<mosaic_0001>
module attributes {stable_mosaic.version = 11 : i64} {
  func.func @_pool_l2norm_kernel(%arg0: i32, %arg1: memref<8x16x128xf32, #tpu.memory_space<vmem>>, %arg2: memref<8x16xf32, #tpu.memory_space<vmem>>, %arg3: memref<8x128xbf16, #tpu.memory_space<vmem>>) attributes {dimension_semantics = [#tpu.dimension_semantics<parallel>], iteration_bounds = array<i64: 1>, scalar_prefetch = 0 : i64, scratch_operands = 0 : i64, tpu.core_type = #tpu.core_type<tc>, window_params = [{transform_indices = @transform_0, window_bounds = array<i64: 8, 16, 128>}, {transform_indices = @transform_1, window_bounds = array<i64: 8, 16>}, {transform_indices = @transform_2, window_bounds = array<i64: 8, 128>}]} {
    %c0 = arith.constant 0 : index
    %c0_0 = arith.constant 0 : index
    %c0_1 = arith.constant 0 : index
    %0 = vector.load %arg1[%c0, %c0_0, %c0_1] : memref<8x16x128xf32, #tpu.memory_space<vmem>>, vector<8x16x128xf32>
    %c0_2 = arith.constant 0 : index
    %c0_3 = arith.constant 0 : index
    %1 = vector.load %arg2[%c0_2, %c0_3] : memref<8x16xf32, #tpu.memory_space<vmem>>, vector<8x16xf32>
    %2 = vector.shape_cast %1 : vector<8x16xf32> to vector<8x16x1xf32>
    %3 = vector.broadcast %2 : vector<8x16x1xf32> to vector<8x16x128xf32>
    %4 = arith.mulf %0, %3 : vector<8x16x128xf32>
    %cst = arith.constant dense<0.000000e+00> : vector<8x128xf32>
    %5 = vector.multi_reduction <add>, %4, %cst [1] : vector<8x16x128xf32> to vector<8x128xf32>
    %cst_4 = arith.constant dense<0.000000e+00> : vector<8xf32>
    %6 = vector.multi_reduction <add>, %1, %cst_4 [1] : vector<8x16xf32> to vector<8xf32>
    %7 = vector.shape_cast %6 : vector<8xf32> to vector<8x1xf32>
    %cst_5 = arith.constant 9.99999993E-9 : f32
    %8 = vector.broadcast %cst_5 : f32 to vector<8x1xf32>
    %9 = arith.maximumf %7, %8 : vector<8x1xf32>
    %10 = vector.broadcast %9 : vector<8x1xf32> to vector<8x128xf32>
    %11 = arith.divf %5, %10 : vector<8x128xf32>
    %12 = arith.mulf %11, %11 : vector<8x128xf32>
    %cst_6 = arith.constant dense<0.000000e+00> : vector<8xf32>
    %13 = vector.multi_reduction <add>, %12, %cst_6 [1] : vector<8x128xf32> to vector<8xf32>
    %14 = vector.shape_cast %13 : vector<8xf32> to vector<8x1xf32>
    %cst_7 = arith.constant 1.000000e-16 : f32
    %15 = vector.broadcast %cst_7 : f32 to vector<8x1xf32>
    %16 = arith.maximumf %14, %15 : vector<8x1xf32>
    %17 = math.rsqrt %16 : vector<8x1xf32>
    %18 = vector.broadcast %17 : vector<8x1xf32> to vector<8x128xf32>
    %19 = arith.mulf %11, %18 : vector<8x128xf32>
    %20 = arith.truncf %19 : vector<8x128xf32> to vector<8x128xbf16>
    %c0_8 = arith.constant 0 : index
    %c0_9 = arith.constant 0 : index
    %21 = vector.load %arg3[%c0_8, %c0_9] : memref<8x128xbf16, #tpu.memory_space<vmem>>, vector<8x128xbf16>
    tpu.vector_store %arg3[%c0_8, %c0_9], %20 {strides = array<i32>} : memref<8x128xbf16, #tpu.memory_space<vmem>>, vector<8x128xbf16>,
    return
  }
  func.func @transform_0(%arg0: i32) -> (i32, i32, i32) {
    %c0_i32 = arith.constant 0 : i32
    %c0_i32_0 = arith.constant 0 : i32
    %c0_i32_1 = arith.constant 0 : i32
    return %arg0, %c0_i32, %c0_i32_0 : i32, i32, i32
  }
  func.func @transform_1(%arg0: i32) -> (i32, i32) {
    %c0_i32 = arith.constant 0 : i32
    %c0_i32_0 = arith.constant 0 : i32
    return %arg0, %c0_i32 : i32, i32
  }
  func.func @transform_2(%arg0: i32) -> (i32, i32) {
    %c0_i32 = arith.constant 0 : i32
    %c0_i32_0 = arith.constant 0 : i32
    return %arg0, %c0_i32 : i32, i32
  }
}

</mosaic_0001>

<llo_original>
// kernel: tpu_custom_call.1
$region0: #{tpu_custom_call.1}
  #allocation0 [shape = 'u32[]', space=smem, size = 0x4, offset = 0x4, fixed_abs, tag = 'smem constant byte address 0x4 - core index']
  #allocation1 [shape = 'u32[144,128]{1,0:T(1,128)}', space=vmem, size = 0x12000, scoped, tag = 'internal scratch']
  %s0 = inlined_call_operand.hbm [shape: f32[8,16,128], index: 0, kind: input, shape index: {}]
  %s1 = inlined_call_operand.hbm [shape: f32[8,16], index: 1, kind: input, shape index: {}]
  %s2 = inlined_call_operand.hbm [shape: bf16[8,128], index: 2, kind: output, shape index: {}]
  %s3 = sld [smem:[#allocation0]]
  $region26: #{tpu_custom_call.1} parent=0
    _
  %s5 = ssub.s32 1, %s3
  %s6 = scalar_select 0, %s5, %s3
  $region1: #{tpu_custom_call.1} parent=0
    #allocation2 [shape = 'u8[65536]{0}', space=vmem, size = 0x10000, scoped, tag = 'input window, operand 0, single buffered']
    #allocation3 [shape = 's32[1]{0}', space=sflag, size = 0x4, scoped, tag = 'scoped memory for tpu_custom_call.1']
    #allocation4 [shape = 's32[1]{0}', space=sflag, size = 0x4, scoped, tag = 'scoped memory for tpu_custom_call.1']
    #allocation5 [shape = 'u8[4096]{0}', space=vmem, size = 0x1000, scoped, tag = 'input window, operand 1, single buffered']
    #allocation6 [shape = 's32[1]{0}', space=sflag, size = 0x4, scoped, tag = 'scoped memory for tpu_custom_call.1']
    #allocation7 [shape = 'u8[2048]{0}', space=vmem, size = 0x800, scoped, tag = 'output window, operand 0, single buffered']
    %7 = vsyncpa [#allocation3], 0
    %8 = vsyncpa [#allocation6], 0
    %9 = vsyncpa [#allocation4], 0
    // Predicated region
    $region2: #{tpu_custom_call.1} parent=1 // pred_check
      _
    $region3: #{tpu_custom_call.1} parent=1 // pred_check_branch
      %11 = sbr.rel (0) target = $region5
    $region4: #{tpu_custom_call.1} parent=1 // pred_region
      %s13 = ssub.s32 2048, 2048
      %14 = vsyncadd [#allocation3], %s13
      %s15 = sshll.u32 [#allocation2], 4
      %s16 = int_to_ptr.vmem [resolvable:$true] %s15
      %21 = dma.hbm_to_vmem [thread:$0]  %s0, 2048, %s16, [#allocation3], 128, 128, 8
    $region5: #{tpu_custom_call.1} parent=1 // pred_fallthru
      _
    // Predicated region
    $region6: #{tpu_custom_call.1} parent=1 // pred_check
      _
    $region7: #{tpu_custom_call.1} parent=1 // pred_check_branch
      %23 = sbr.rel (0) target = $region9
    $region8: #{tpu_custom_call.1} parent=1 // pred_region
      %s25 = ssub.s32 128, 128
      %26 = vsyncadd [#allocation6], %s25
      %s28 = sshll.u32 [#allocation5], 4
      %s29 = int_to_ptr.vmem [resolvable:$true] %s28
      %31 = dma.hbm_to_vmem [thread:$0]  %s1, 128, %s29, [#allocation6]
    $region9: #{tpu_custom_call.1} parent=1 // pred_fallthru
      _
    // Predicated region
    $region10: #{tpu_custom_call.1} parent=1 // pred_check
      _
    $region11: #{tpu_custom_call.1} parent=1 // pred_check_branch
      %33 = sbr.rel (0) target = $region13
    $region12: #{tpu_custom_call.1} parent=1 // pred_region
      %34 = dma.done [#allocation3], 2048
    $region13: #{tpu_custom_call.1} parent=1 // pred_fallthru
      _
    // Predicated region
    $region14: #{tpu_custom_call.1} parent=1 // pred_check
      _
    $region15: #{tpu_custom_call.1} parent=1 // pred_check_branch
      %36 = sbr.rel (0) target = $region17
    $region16: #{tpu_custom_call.1} parent=1 // pred_region
      %37 = dma.done [#allocation6], 128
    $region17: #{tpu_custom_call.1} parent=1 // pred_fallthru
      _
    %v38 = vld [vmem:[#allocation2] sm:$0xff]
    %v39 = vld [vmem:[#allocation2 + $0x8] sm:$0xff]
    %v40 = vld [vmem:[#allocation2 + $0x10] sm:$0xff]
    %v41 = vld [vmem:[#allocation2 + $0x18] sm:$0xff]
    %v42 = vld [vmem:[#allocation2 + $0x20] sm:$0xff]
    %v43 = vld [vmem:[#allocation2 + $0x28] sm:$0xff]
    %v44 = vld [vmem:[#allocation2 + $0x30] sm:$0xff]
    %v45 = vld [vmem:[#allocation2 + $0x38] sm:$0xff]
    %v46 = vld [vmem:[#allocation2 + $0x40] sm:$0xff]
    %v47 = vld [vmem:[#allocation2 + $0x48] sm:$0xff]
    %v48 = vld [vmem:[#allocation2 + $0x50] sm:$0xff]
    %v49 = vld [vmem:[#allocation2 + $0x58] sm:$0xff]
    %v50 = vld [vmem:[#allocation2 + $0x60] sm:$0xff]
    %v51 = vld [vmem:[#allocation2 + $0x68] sm:$0xff]
    %v52 = vld [vmem:[#allocation2 + $0x70] sm:$0xff]
    %v53 = vld [vmem:[#allocation2 + $0x78] sm:$0xff]
    %v54 = vld [vmem:[#allocation5] sm:$0xff]
    %v55 = vlaneseq
    %v56 = vshrl.u32 %v55, 7
    %v57 = vsub.s32 0, %v56
    %v58 = vrot.slane %v54, %v57
    %60 = vbcast.lane.b32.xlu0 %v58, 256
    %v61 = vpop.permute.xlu0 %60
    %s63 = sor.u32 256, 8
    %64 = vbcast.lane.b32.xlu0 %v58, %s63
    %v65 = vpop.permute.xlu0 %64
    %v66 = vlaneseq
    %v67 = vshrl.u32 %v66, 7
    %v68 = vsub.s32 1, %v67
    %v69 = vrot.slane %v54, %v68
    %71 = vbcast.lane.b32.xlu0 %v69, 256
    %v72 = vpop.permute.xlu0 %71
    %s74 = sor.u32 256, 8
    %75 = vbcast.lane.b32.xlu0 %v69, %s74
    %v76 = vpop.permute.xlu0 %75
    %v77 = vlaneseq
    %v78 = vshrl.u32 %v77, 7
    %v79 = vsub.s32 2, %v78
    %v80 = vrot.slane %v54, %v79
    %82 = vbcast.lane.b32.xlu0 %v80, 256
    %v83 = vpop.permute.xlu0 %82
    %s85 = sor.u32 256, 8
    %86 = vbcast.lane.b32.xlu0 %v80, %s85
    %v87 = vpop.permute.xlu0 %86
    %v88 = vlaneseq
    %v89 = vshrl.u32 %v88, 7
    %v90 = vsub.s32 3, %v89
    %v91 = vrot.slane %v54, %v90
    %93 = vbcast.lane.b32.xlu0 %v91, 256
    %v94 = vpop.permute.xlu0 %93
    %s96 = sor.u32 256, 8
    %97 = vbcast.lane.b32.xlu0 %v91, %s96
    %v98 = vpop.permute.xlu0 %97
    %v99 = vlaneseq
    %v100 = vshrl.u32 %v99, 7
    %v101 = vsub.s32 4, %v100
    %v102 = vrot.slane %v54, %v101
    %104 = vbcast.lane.b32.xlu0 %v102, 256
    %v105 = vpop.permute.xlu0 %104
    %s107 = sor.u32 256, 8
    %108 = vbcast.lane.b32.xlu0 %v102, %s107
    %v109 = vpop.permute.xlu0 %108
    %v110 = vlaneseq
    %v111 = vshrl.u32 %v110, 7
    %v112 = vsub.s32 5, %v111
    %v113 = vrot.slane %v54, %v112
    %115 = vbcast.lane.b32.xlu0 %v113, 256
    %v116 = vpop.permute.xlu0 %115
    %s118 = sor.u32 256, 8
    %119 = vbcast.lane.b32.xlu0 %v113, %s118
    %v120 = vpop.permute.xlu0 %119
    %v121 = vlaneseq
    %v122 = vshrl.u32 %v121, 7
    %v123 = vsub.s32 6, %v122
    %v124 = vrot.slane %v54, %v123
    %126 = vbcast.lane.b32.xlu0 %v124, 256
    %v127 = vpop.permute.xlu0 %126
    %s129 = sor.u32 256, 8
    %130 = vbcast.lane.b32.xlu0 %v124, %s129
    %v131 = vpop.permute.xlu0 %130
    %v132 = vlaneseq
    %v133 = vshrl.u32 %v132, 7
    %v134 = vsub.s32 7, %v133
    %v135 = vrot.slane %v54, %v134
    %137 = vbcast.lane.b32.xlu0 %v135, 256
    %v138 = vpop.permute.xlu0 %137
    %s140 = sor.u32 256, 8
    %141 = vbcast.lane.b32.xlu0 %v135, %s140
    %v142 = vpop.permute.xlu0 %141
    %v143 = vmul.f32 %v38, %v61
    %v144 = vmul.f32 %v39, %v65
    %v145 = vmul.f32 %v40, %v72
    %v146 = vmul.f32 %v41, %v76
    %v147 = vmul.f32 %v42, %v83
    %v148 = vmul.f32 %v43, %v87
    %v149 = vmul.f32 %v44, %v94
    %v150 = vmul.f32 %v45, %v98
    %v151 = vmul.f32 %v46, %v105
    %v152 = vmul.f32 %v47, %v109
    %v153 = vmul.f32 %v48, %v116
    %v154 = vmul.f32 %v49, %v120
    %v155 = vmul.f32 %v50, %v127
    %v156 = vmul.f32 %v51, %v131
    %v157 = vmul.f32 %v52, %v138
    %v158 = vmul.f32 %v53, %v142
    %v159 = vadd.f32 %v143, %v144
    %v160 = vrot.slane %v159, 4
    %v161 = vadd.f32 %v159, %v160
    %v162 = vrot.slane %v161, 2
    %v163 = vadd.f32 %v161, %v162
    %v164 = vrot.slane %v163, 1
    %v165 = vadd.f32 %v163, %v164
    %v166 = vadd.f32 %v145, %v146
    %v167 = vrot.slane %v166, 4
    %v168 = vadd.f32 %v166, %v167
    %v169 = vrot.slane %v168, 2
    %v170 = vadd.f32 %v168, %v169
    %v171 = vrot.slane %v170, 1
    %v172 = vadd.f32 %v170, %v171
    %v173 = vadd.f32 %v147, %v148
    %v174 = vrot.slane %v173, 4
    %v175 = vadd.f32 %v173, %v174
    %v176 = vrot.slane %v175, 2
    %v177 = vadd.f32 %v175, %v176
    %v178 = vrot.slane %v177, 1
    %v179 = vadd.f32 %v177, %v178
    %v180 = vadd.f32 %v149, %v150
    %v181 = vrot.slane %v180, 4
    %v182 = vadd.f32 %v180, %v181
    %v183 = vrot.slane %v182, 2
    %v184 = vadd.f32 %v182, %v183
    %v185 = vrot.slane %v184, 1
    %v186 = vadd.f32 %v184, %v185
    %v187 = vadd.f32 %v151, %v152
    %v188 = vrot.slane %v187, 4
    %v189 = vadd.f32 %v187, %v188
    %v190 = vrot.slane %v189, 2
    %v191 = vadd.f32 %v189, %v190
    %v192 = vrot.slane %v191, 1
    %v193 = vadd.f32 %v191, %v192
    %v194 = vadd.f32 %v153, %v154
    %v195 = vrot.slane %v194, 4
    %v196 = vadd.f32 %v194, %v195
    %v197 = vrot.slane %v196, 2
    %v198 = vadd.f32 %v196, %v197
    %v199 = vrot.slane %v198, 1
    %v200 = vadd.f32 %v198, %v199
    %v201 = vadd.f32 %v155, %v156
    %v202 = vrot.slane %v201, 4
    %v203 = vadd.f32 %v201, %v202
    %v204 = vrot.slane %v203, 2
    %v205 = vadd.f32 %v203, %v204
    %v206 = vrot.slane %v205, 1
    %v207 = vadd.f32 %v205, %v206
    %v208 = vadd.f32 %v157, %v158
    %v209 = vrot.slane %v208, 4
    %v210 = vadd.f32 %v208, %v209
    %v211 = vrot.slane %v210, 2
    %v212 = vadd.f32 %v210, %v211
    %v213 = vrot.slane %v212, 1
    %v214 = vadd.f32 %v212, %v213
    %vm215 = vcmask 130048
    %v216 = vsel %vm215, %v54, 0.0
    %217 = vadd.xlane.f32.xlu0 %v216
    %v218 = vpop.xlane.xlu0 %217
    %v219 = vmax.f32 %v218, 1e-08
    %v221 = vrot.slane %v219, 1
    %v222 = vrot.slane %v219, 2
    %v223 = vrot.slane %v219, 3
    %v224 = vrot.slane %v219, 4
    %v225 = vrot.slane %v219, 5
    %v226 = vrot.slane %v219, 6
    %v227 = vrot.slane %v219, 7
    %v236 = vrcp.pop %v219
    %v237 = vmul.f32 %v165, %v236
    %v238 = vrcp.pop %v221
    %v239 = vmul.f32 %v172, %v238
    %v240 = vrcp.pop %v222
    %v241 = vmul.f32 %v179, %v240
    %v242 = vrcp.pop %v223
    %v243 = vmul.f32 %v186, %v242
    %v244 = vrcp.pop %v224
    %v245 = vmul.f32 %v193, %v244
    %v246 = vrcp.pop %v225
    %v247 = vmul.f32 %v200, %v246
    %v248 = vrcp.pop %v226
    %v249 = vmul.f32 %v207, %v248
    %v250 = vrcp.pop %v227
    %v251 = vmul.f32 %v214, %v250
    %v252 = vmul.f32 %v237, %v237
    %v253 = vmul.f32 %v239, %v239
    %v254 = vmul.f32 %v241, %v241
    %v255 = vmul.f32 %v243, %v243
    %v256 = vmul.f32 %v245, %v245
    %v257 = vmul.f32 %v247, %v247
    %v258 = vmul.f32 %v249, %v249
    %v259 = vmul.f32 %v251, %v251
    %v268 = vrot.slane %v253, 7
    %vm269 = vcmask 1041409
    %v270 = vsel %vm269, %v268, %v252
    %v271 = vrot.slane %v254, 6
    %vm272 = vcmask 1042434
    %v273 = vsel %vm272, %v271, %v270
    %v274 = vrot.slane %v255, 5
    %vm275 = vcmask 1043459
    %v276 = vsel %vm275, %v274, %v273
    %v277 = vrot.slane %v256, 4
    %vm278 = vcmask 1044484
    %v279 = vsel %vm278, %v277, %v276
    %v280 = vrot.slane %v257, 3
    %vm281 = vcmask 1045509
    %v282 = vsel %vm281, %v280, %v279
    %v283 = vrot.slane %v258, 2
    %vm284 = vcmask 1046534
    %v285 = vsel %vm284, %v283, %v282
    %v286 = vrot.slane %v259, 1
    %vm287 = vcmask 1047559
    %v288 = vsel %vm287, %v286, %v285
    %290 = vadd.xlane.f32.xlu0 %v288
    %v291 = vpop.xlane.xlu0 %290
    %v292 = vmax.f32 %v291, 1e-16
    %v293 = vrsqrt.pop %v292
    %v295 = vrot.slane %v293, 1
    %v296 = vrot.slane %v293, 2
    %v297 = vrot.slane %v293, 3
    %v298 = vrot.slane %v293, 4
    %v299 = vrot.slane %v293, 5
    %v300 = vrot.slane %v293, 6
    %v301 = vrot.slane %v293, 7
    %v310 = vmul.f32 %v237, %v293
    %v311 = vmul.f32 %v239, %v295
    %v312 = vmul.f32 %v241, %v296
    %v313 = vmul.f32 %v243, %v297
    %v314 = vmul.f32 %v245, %v298
    %v315 = vmul.f32 %v247, %v299
    %v316 = vmul.f32 %v249, %v300
    %v317 = vmul.f32 %v251, %v301
    %v318 = vpack.c.bf16 %v310, %v310
    %v319 = vpack.c.bf16 %v311, %v311
    %v320 = vpack.c.bf16 %v312, %v312
    %v321 = vpack.c.bf16 %v313, %v313
    %v322 = vpack.c.bf16 %v314, %v314
    %v323 = vpack.c.bf16 %v315, %v315
    %v324 = vpack.c.bf16 %v316, %v316
    %v325 = vpack.c.bf16 %v317, %v317
    %v334 = vunpack.c.l.b16 %v318
    %v335 = vunpack.c.l.b16 %v319
    %v336 = vunpack.c.l.b16 %v320
    %v337 = vunpack.c.l.b16 %v321
    %v338 = vunpack.c.l.b16 %v322
    %v339 = vunpack.c.l.b16 %v323
    %v340 = vunpack.c.l.b16 %v324
    %v341 = vunpack.c.l.b16 %v325
    %v342 = vpack.c.b16 %v334, %v334
    %v343 = vpack.c.b16 %v335, %v335
    %v344 = vpack.c.b16 %v336, %v336
    %v345 = vpack.c.b16 %v337, %v337
    %v346 = vpack.c.b16 %v338, %v338
    %v347 = vpack.c.b16 %v339, %v339
    %v348 = vpack.c.b16 %v340, %v340
    %v349 = vpack.c.b16 %v341, %v341
    %v350 = vunpack.c.l.b16 %v342
    %v351 = vunpack.c.l.b16 %v343
    %v352 = vunpack.c.l.b16 %v344
    %v353 = vunpack.c.l.b16 %v345
    %v354 = vunpack.c.l.b16 %v346
    %v355 = vunpack.c.l.b16 %v347
    %v356 = vunpack.c.l.b16 %v348
    %v357 = vunpack.c.l.b16 %v349
    %v358 = vrot.slane %v351, 7
    %v359 = vsel %vm269, %v358, %v350
    %v360 = vrot.slane %v352, 6
    %v361 = vsel %vm272, %v360, %v359
    %v362 = vrot.slane %v353, 5
    %v363 = vsel %vm275, %v362, %v361
    %v364 = vrot.slane %v354, 4
    %v365 = vsel %vm278, %v364, %v363
    %v366 = vrot.slane %v355, 3
    %v367 = vsel %vm281, %v366, %v365
    %v368 = vrot.slane %v356, 2
    %v369 = vsel %vm284, %v368, %v367
    %v370 = vrot.slane %v357, 1
    %v371 = vsel %vm287, %v370, %v369
    %v372 = vpack.c.b16 %v371, %v371
    %374 = vst [vmem:[#allocation7] sm:$0xf] %v372
    // Predicated region
    $region18: #{tpu_custom_call.1} parent=1 // pred_check
      _
    $region19: #{tpu_custom_call.1} parent=1 // pred_check_branch
      %376 = sbr.rel (0) target = $region21
    $region20: #{tpu_custom_call.1} parent=1 // pred_region
      %s378 = ssub.s32 64, 64
      %379 = vsyncadd [#allocation4], %s378
      %s381 = sshll.u32 [#allocation7], 4
      %s382 = int_to_ptr.vmem [resolvable:$true] %s381
      %384 = dma.vmem_to_hbm [thread:$0]  %s382, 64, %s2, [#allocation4]
    $region21: #{tpu_custom_call.1} parent=1 // pred_fallthru
      _
    // Predicated region
    $region22: #{tpu_custom_call.1} parent=1 // pred_check
      _
    $region23: #{tpu_custom_call.1} parent=1 // pred_check_branch
      %386 = sbr.rel (0) target = $region25
    $region24: #{tpu_custom_call.1} parent=1 // pred_region
      %387 = dma.done [#allocation4], 64
    $region25: #{tpu_custom_call.1} parent=1 // pred_fallthru
      _
    %388 = vsyncpa [#allocation3], 1
    %389 = vsyncpa [#allocation6], 1
    %390 = vsyncpa [#allocation4], 1

</llo_original>
